<compile_context>
chip_gen: v6e
topology: v6e:2x2x1
jax: 0.10.0
libtpu: 0.0.40
codegen_flags: <defaults>
</compile_context>

<pallas_src>
import functools

import jax
import jax.numpy as jnp
from jax.experimental import pallas as pl
from jax.experimental.pallas import tpu as pltpu

NUM_TARGETS = 2
ANCHOR_SCALES = [2, 4, 8]
VGG_CFG = [64, 64, 'M', 128, 128, 'M', 256, 256, 256, 'M',
           512, 512, 512, 'M', 512, 512, 512]

_ACC_BUDGET_BYTES = 128 * 1024          # f32 accumulator kept ~vreg-resident


def _default_vmem_limit():
    try:
        cap = int(pltpu.get_tpu_info().vmem_capacity_bytes)
    except Exception:
        cap = 64 * 1024 * 1024          # conservative fallback (safe on v7x)
    return max(16 * 1024 * 1024, min(cap // 2, 64 * 1024 * 1024))


_VMEM_LIMIT = _default_vmem_limit()


def _round_up(x, m):
    return ((x + m - 1) // m) * m


def _pick_rows_out(ho_out, wo2, cout, pool_factor):
    """Largest divisor of ho_out such that the per-step f32 accumulator stays
    within the byte budget and there are >=2 grid steps (v7x megacore)."""
    budget = max(1, _ACC_BUDGET_BYTES // (wo2 * cout * 4 * pool_factor))
    cap = max(1, ho_out // 2) if ho_out >= 2 else 1
    best = 1
    for t in range(1, ho_out + 1):
        if ho_out % t == 0 and t <= budget and t <= cap:
            best = t
    return best


# ---------------------------------------------------------------------------
# Pallas kernels
# ---------------------------------------------------------------------------
def _conv_kernel(*refs, kh, kw, ph, pw, rows, wo, wo2, h_in, w_in,
                 relu, pool, k_mode, has_bias_map):
    """Stride-1 conv, one tile of `rows` output rows per grid step.

    refs: x_ref (1,H,W,Cin) bf16 full unpadded image (resident across row
    tiles), w_ref (K-folded weights, bf16), b_ref (1,Cout) f32,
    [bm_ref (1,rows,wo,Cout) f32 spatial bias], o_ref output tile,
    band_ref VMEM scratch (rows+kh-1, band_w, Cin) bf16 zero-padded band."""
    if has_bias_map:
        x_ref, w_ref, b_ref, bm_ref, o_ref, band_ref = refs
    else:
        x_ref, w_ref, b_ref, o_ref, band_ref = refs
        bm_ref = None
    cin = x_ref.shape[-1]
    cout = o_ref.shape[-1]
    band_rows = rows + kh - 1
    r0 = pl.multiple_of(pl.program_id(1) * rows, rows)

    # ---- on-chip zero padding: build the padded input band in VMEM scratch.
    band_ref[...] = jnp.zeros_like(band_ref)
    for i in range(band_rows):
        src = r0 + i - ph

        @pl.when((src >= 0) & (src < h_in))
        def _copy(i=i, src=src):
            band_ref[pl.ds(i, 1), pl.ds(pw, w_in), :] = \
                x_ref[0, pl.ds(src, 1), :, :]

    # ---- taps folded into the MXU K dimension.
    if k_mode == 'all':
        slabs = [band_ref[dh:dh + rows, dw:dw + wo2, :]
                 for dh in range(kh) for dw in range(kw)]
        slab = jnp.concatenate(slabs, axis=-1).reshape(rows * wo2, kh * kw * cin)
        acc = jnp.dot(slab, w_ref[...], preferred_element_type=jnp.float32)
    elif k_mode == 'row':
        acc = jnp.zeros((rows * wo2, cout), jnp.float32)
        for dh in range(kh):
            slabs = [band_ref[dh:dh + rows, dw:dw + wo2, :] for dw in range(kw)]
            slab = jnp.concatenate(slabs, axis=-1).reshape(rows * wo2, kw * cin)
            acc = acc + jnp.dot(slab, w_ref[dh],
                                preferred_element_type=jnp.float32)
    else:  # 'tap' (cin already >= MXU K depth)
        acc = jnp.zeros((rows * wo2, cout), jnp.float32)
        for dh in range(kh):
            for dw in range(kw):
                patch = band_ref[dh:dh + rows, dw:dw + wo2, :]
                acc = acc + jnp.dot(patch.reshape(rows * wo2, cin),
                                    w_ref[dh, dw],
                                    preferred_element_type=jnp.float32)

    # ---- epilogue: bias (+ optional spatial bias), ReLU, fused 2x2 maxpool.
    acc = acc + b_ref[...]
    out = acc.reshape(rows, wo2, cout)
    if wo != wo2:
        out = out[:, :wo, :]                 # drop lane-padding garbage columns
    if has_bias_map:
        out = out + bm_ref[0]
    if relu:
        out = jnp.maximum(out, 0.0)
    if pool:
        out = out.reshape(rows // 2, 2, wo // 2, 2, cout).max(axis=(1, 3))
    o_ref[0] = out.astype(o_ref.dtype)


def conv2d_nhwc(x, w, b, *, padding, relu=False, pool=False, out_hw=None,
                bias_map=None, out_dtype=jnp.float32):
    """x: (N,H,W,Cin), w: (Kh,Kw,Cin,Cout), b: (Cout,).  Stride-1 F.conv2d
    semantics (no kernel flip), zero padding done on-chip.  out_hw crops the
    output to its top-left corner (== select_to_match_dimensions).  pool fuses
    a trailing 2x2 max-pool; bias_map adds a per-output-pixel f32 map."""
    n, h, wd, cin = x.shape
    kh, kw, _, cout = w.shape
    ph, pw = padding

    ho_full = h + 2 * ph - kh + 1
    wo_full = wd + 2 * pw - kw + 1
    ho = ho_full if out_hw is None else min(ho_full, out_hw[0])
    wo = wo_full if out_hw is None else min(wo_full, out_hw[1])
    wo2 = _round_up(wo, 8)

    pool_f = 2 if pool else 1
    assert ho % pool_f == 0 and wo % pool_f == 0
    assert bias_map is None or not pool
    ho_out, wo_out = ho // pool_f, wo // pool_f

    rows_out = _pick_rows_out(ho_out, wo2, cout, pool_f)
    rows = rows_out * pool_f                 # conv-output rows per grid step
    band_rows = rows + kh - 1
    band_w = max(wo2 + kw - 1, wd + 2 * pw)

    x16 = x.astype(jnp.bfloat16)
    if kh * kw * cin <= 256:                 # fold everything into K
        k_mode = 'all'
        w2 = w.reshape(kh * kw * cin, cout).astype(jnp.bfloat16)
        w_spec = pl.BlockSpec((kh * kw * cin, cout), lambda i, j: (0, 0))
    elif kw * cin <= 512:                    # fold the kw taps per kernel row
        k_mode = 'row'
        w2 = w.reshape(kh, kw * cin, cout).astype(jnp.bfloat16)
        w_spec = pl.BlockSpec((kh, kw * cin, cout), lambda i, j: (0, 0, 0))
    else:                                    # cin already saturates the MXU K
        k_mode = 'tap'
        w2 = w.astype(jnp.bfloat16)
        w_spec = pl.BlockSpec((kh, kw, cin, cout), lambda i, j: (0, 0, 0, 0))
    b2 = b.reshape(1, cout).astype(jnp.float32)

    in_specs = [
        # full unpadded image; block index constant along the row axis ->
        # stays resident in VMEM (no re-DMA per row tile).
        pl.BlockSpec((1, h, wd, cin), lambda i, j: (i, 0, 0, 0)),
        w_spec,
        pl.BlockSpec((1, cout), lambda i, j: (0, 0)),
    ]
    args = [x16, w2, b2]
    if bias_map is not None:
        in_specs.append(pl.BlockSpec((1, rows, wo, cout),
                                     lambda i, j: (i, j, 0, 0)))
        args.append(bias_map.astype(jnp.float32))

    kernel = functools.partial(
        _conv_kernel, kh=kh, kw=kw, ph=ph, pw=pw, rows=rows, wo=wo, wo2=wo2,
        h_in=h, w_in=wd, relu=relu, pool=pool, k_mode=k_mode,
        has_bias_map=bias_map is not None)

    # TODO(synk): for very large images the full-image VMEM residency should be
    # replaced by row-band blocks with a (kh-1) halo.
    return pl.pallas_call(
        kernel,
        out_shape=jax.ShapeDtypeStruct((n, ho_out, wo_out, cout), out_dtype),
        grid=(n, ho_out // rows_out),
        in_specs=in_specs,
        out_specs=pl.BlockSpec((1, rows_out, wo_out, cout),
                               lambda i, j: (i, j, 0, 0)),
        scratch_shapes=[pltpu.VMEM((band_rows, band_w, cin), jnp.bfloat16)],
        compiler_params=pltpu.CompilerParams(
            dimension_semantics=("parallel", "parallel"),
            vmem_limit_bytes=_VMEM_LIMIT),
    )(*args)


def _rpn_head_kernel(corr_ref, diff_ref, ws_ref, bs_ref, wb_ref, bb_ref,
                     prob_ref, bbox_ref, *, a, c_half):
    """Fused score_conv + bbox_conv (1x1) + pair softmax.  Whole row-tile done
    as single matmuls; the 64-channel weight is split into corr/diff halves so
    the activations are never concatenated."""
    hr, w = corr_ref.shape[1], corr_ref.shape[2]
    m = hr * w
    xc = corr_ref[0].reshape(m, c_half)
    xd = diff_ref[0].reshape(m, c_half)
    ws = ws_ref[...]
    wb = wb_ref[...]

    score = (jnp.dot(xc, ws[:c_half, :], preferred_element_type=jnp.float32)
             + jnp.dot(xd, ws[c_half:, :], preferred_element_type=jnp.float32)
             + bs_ref[...])
    bbox = (jnp.dot(xc, wb[:c_half, :], preferred_element_type=jnp.float32)
            + jnp.dot(xd, wb[c_half:, :], preferred_element_type=jnp.float32)
            + bb_ref[...])

    # reshape_layer(x,2) -> softmax(dim=1) -> reshape_layer(x,2A): channel c
    # pairs with channel c + A.  Exact division keeps pair sums == 1.
    bg = score[:, :a]
    fg = score[:, a:]
    mx = jnp.maximum(bg, fg)
    ea = jnp.exp(bg - mx)
    eb = jnp.exp(fg - mx)
    inv = 1.0 / (ea + eb)
    prob = jnp.concatenate([ea * inv, eb * inv], axis=-1)
    prob_ref[0] = prob.reshape(hr, w, 2 * a).astype(prob_ref.dtype)
    bbox_ref[0] = bbox.reshape(hr, w, 4 * a).astype(bbox_ref.dtype)


def rpn_heads(corr_rpn, diff_rpn, score_params, bbox_params):
    n, h, w, c_half = corr_rpn.shape
    ws, bs = score_params
    wb, bb = bbox_params
    cs, cb = ws.shape[-1], wb.shape[-1]
    a = cs // 2
    corr16 = corr_rpn.astype(jnp.bfloat16)
    diff16 = diff_rpn.astype(jnp.bfloat16)
    ws2 = ws.reshape(-1, cs).astype(jnp.bfloat16)      # (64, 2A)
    wb2 = wb.reshape(-1, cb).astype(jnp.bfloat16)      # (64, 4A)
    bs2 = bs.reshape(1, cs).astype(jnp.float32)
    bb2 = bb.reshape(1, cb).astype(jnp.float32)

    hr = h // 2 if (h % 2 == 0 and h >= 2) else h      # >=2 steps for v7x
    grid = (n, h // hr)
    act_spec = pl.BlockSpec((1, hr, w, c_half), lambda i, j: (i, j, 0, 0))
    kernel = functools.partial(_rpn_head_kernel, a=a, c_half=c_half)
    prob, bbox = pl.pallas_call(
        kernel,
        out_shape=(jax.ShapeDtypeStruct((n, h, w, cs), jnp.float32),
                   jax.ShapeDtypeStruct((n, h, w, cb), jnp.float32)),
        grid=grid,
        in_specs=[act_spec, act_spec,
                  pl.BlockSpec((2 * c_half, cs), lambda i, j: (0, 0)),
                  pl.BlockSpec((1, cs), lambda i, j: (0, 0)),
                  pl.BlockSpec((2 * c_half, cb), lambda i, j: (0, 0)),
                  pl.BlockSpec((1, cb), lambda i, j: (0, 0))],
        out_specs=(pl.BlockSpec((1, hr, w, cs), lambda i, j: (i, j, 0, 0)),
                   pl.BlockSpec((1, hr, w, cb), lambda i, j: (i, j, 0, 0))),
        compiler_params=pltpu.CompilerParams(
            dimension_semantics=("parallel", "parallel"),
            vmem_limit_bytes=_VMEM_LIMIT),
    )(corr16, diff16, ws2, bs2, wb2, bb2)
    return prob, bbox


# ---------------------------------------------------------------------------
# Glue (pure JAX): parameter setup, trunk assembly, network forward
# ---------------------------------------------------------------------------
def vgg16_features(vgg_params, x):
    """VGG16(bn=True) conv trunk (conv1_1..conv5_3, 4 max pools -> stride 16).
    Eval-mode BatchNorm folded into conv weights/biases; each 2x2 max pool is
    fused into the epilogue of the preceding conv.  Intermediate activations
    stay in bf16; the returned feature map is f32."""
    n_conv = sum(1 for v in VGG_CFG if v != 'M')
    li = 0
    i = 0
    while i < len(VGG_CFG):
        v = VGG_CFG[i]
        assert v != 'M'
        w, b = vgg_params[li]
        li += 1
        pool = (i + 1 < len(VGG_CFG) and VGG_CFG[i + 1] == 'M')
        out_dtype = jnp.float32 if li == n_conv else jnp.bfloat16
        x = conv2d_nhwc(x, w, b, padding=(1, 1), relu=True, pool=pool,
                        out_dtype=out_dtype)
        i += 2 if pool else 1
    return x


def init_params(key):
    params = {}
    vgg = []
    cin = 3
    kiter = key
    for v in VGG_CFG:
        if v == 'M':
            continue
        kiter, kw_, kb_, kg, kbeta, km, kv = jax.random.split(kiter, 7)
        w = jax.random.normal(kw_, (3, 3, cin, v), jnp.float32) * (2.0 / (9 * cin)) ** 0.5
        b = 0.01 * jax.random.normal(kb_, (v,), jnp.float32)
        gamma = 1.0 + 0.1 * jax.random.normal(kg, (v,), jnp.float32)
        beta = 0.1 * jax.random.normal(kbeta, (v,), jnp.float32)
        mean = 0.1 * jax.random.normal(km, (v,), jnp.float32)
        var = 1.0 + 0.1 * jax.random.uniform(kv, (v,), jnp.float32)
        scale = gamma / jnp.sqrt(var + 1e-5)       # fold BN into the conv
        vgg.append((w * scale, (b - mean) * scale + beta))
        cin = v
    params['vgg'] = vgg

    def head(k, kh, kw_, ci, co):
        k1, k2 = jax.random.split(k)
        w = jax.random.normal(k1, (kh, kw_, ci, co), jnp.float32) * (2.0 / (kh * kw_ * ci)) ** 0.5
        b = 0.01 * jax.random.normal(k2, (co,), jnp.float32)
        return w, b

    kiter, k1, k2, k3, k4 = jax.random.split(kiter, 5)
    a = len(ANCHOR_SCALES) * 3
    params['corr_conv1'] = head(k1, 3, 3, NUM_TARGETS, 32)
    params['diff_conv1'] = head(k2, 3, 3, 512 * NUM_TARGETS, 32)
    params['score_conv'] = head(k3, 1, 1, 64, a * 2)
    params['bbox_conv'] = head(k4, 1, 1, 64, a * 4)
    return params


def tdid_forward(params, targets_data, im_data, target_features_given=False):
    # im_data: (N, H, W, 3) NHWC (the torch code permutes HWC->CHW; we stay NHWC)
    img_features = vgg16_features(params['vgg'], im_data)     # (1, h, w, 512) f32
    if target_features_given:
        target_features = [jnp.asarray(t, jnp.float32) for t in targets_data]
    else:
        target_features = [vgg16_features(params['vgg'], t) for t in targets_data]

    n, h, w, c = img_features.shape
    img16 = img_features.astype(jnp.bfloat16)

    # ---- cross-correlation: all targets stacked into one conv (cout = #targets),
    # exact two-step semantics kept (crop + zero-pad of the intermediate).
    shapes = {tf.shape[1:3] for tf in target_features}
    if len(shapes) == 1:
        th, tw = target_features[0].shape[1:3]
        corr_w = jnp.stack([tf[0] for tf in target_features], axis=-1)   # (th,tw,512,T)
        corr_cat_feats = conv2d_nhwc(
            img16, corr_w, jnp.zeros((corr_w.shape[-1],), jnp.float32),
            padding=(th // 2, tw // 2), out_hw=(h, w), out_dtype=jnp.bfloat16)
    else:  # fall back to one conv per target if spatial sizes differ
        ccs = []
        for tf in target_features:
            th, tw = tf.shape[1:3]
            ccs.append(conv2d_nhwc(
                img16, tf[0][:, :, :, None], jnp.zeros((1,), jnp.float32),
                padding=(th // 2, tw // 2), out_hw=(h, w), out_dtype=jnp.bfloat16))
        corr_cat_feats = jnp.concatenate(ccs, axis=-1)

    # spec passes relu=False for all four head convs.
    corr_rpn_conv1 = conv2d_nhwc(corr_cat_feats, *params['corr_conv1'],
                                 padding=(1, 1), out_dtype=jnp.bfloat16)

    # ---- diff path: conv(concat_k(img - tmax_k); W) == conv(img; sum_k W_k)
    # + border map, where the border map (tmax-dependent, zero-padding aware) is
    # precomputed in plain JAX and added as a spatial bias in the conv epilogue.
    w_diff, b_diff = params['diff_conv1']                 # (3,3,512*T,32), (32,)
    w_img = jnp.zeros(w_diff.shape[:2] + (c, w_diff.shape[-1]), jnp.float32)
    const_tap = jnp.zeros(w_diff.shape[:2] + (w_diff.shape[-1],), jnp.float32)
    for k, tf in enumerate(target_features):
        wk = w_diff[:, :, k * c:(k + 1) * c, :]
        tmax = jnp.max(tf[0], axis=(0, 1))                # spatial max pool (512,)
        w_img = w_img + wk
        const_tap = const_tap - jnp.einsum('c,ijco->ijo', tmax, wk)
    ones = jnp.ones((n, h, w, 1), jnp.float32)
    border_map = jax.lax.conv_general_dilated(
        ones, const_tap[:, :, None, :], (1, 1), ((1, 1), (1, 1)),
        dimension_numbers=('NHWC', 'HWIO', 'NHWC'))       # (1, h, w, 32), tiny
    diff_rpn_conv1 = conv2d_nhwc(img16, w_img, b_diff, padding=(1, 1),
                                 bias_map=border_map, out_dtype=jnp.bfloat16)

    # ---- fused score/bbox 1x1 heads + pair softmax
    rpn_cls_prob_reshape, rpn_bbox_pred = rpn_heads(
        corr_rpn_conv1, diff_rpn_conv1,
        params['score_conv'], params['bbox_conv'])

    # TODO(synk): proposal_layer / anchor_target_layer / build_loss depend on the
    # external NumPy routines proposal_layer_py / anchor_target_layer_py (anchor
    # generation, NMS, target matching); no Pallas equivalent is provided here.
    return rpn_cls_prob_reshape, rpn_bbox_pred, img_features


def head_reference(params, img_features, target_features):
    """Plain-XLA f32 reference for everything after the feature trunk
    (verification only)."""
    def conv(x, w, b, pad):
        return jax.lax.conv_general_dilated(
            x, w, (1, 1), ((pad[0], pad[0]), (pad[1], pad[1])),
            dimension_numbers=('NHWC', 'HWIO', 'NHWC')) + b

    n, h, w, c = img_features.shape
    ccs, diffs = [], []
    for tf in target_features:
        th, tw = tf.shape[1:3]
        cc = conv(img_features, tf[0][:, :, :, None],
                  jnp.zeros((1,), jnp.float32), (th // 2, tw // 2))
        ccs.append(cc[:, :h, :w, :])
        diffs.append(img_features - jnp.max(tf[0], axis=(0, 1)))
    corr_cat = jnp.concatenate(ccs, axis=-1)
    diff_cat = jnp.concatenate(diffs, axis=-1)
    corr_rpn = conv(corr_cat, *params['corr_conv1'], (1, 1))
    diff_rpn = conv(diff_cat, *params['diff_conv1'], (1, 1))
    rpn = jnp.concatenate([corr_rpn, diff_rpn], axis=-1)
    score = conv(rpn, *params['score_conv'], (0, 0))
    bbox = conv(rpn, *params['bbox_conv'], (0, 0))
    a = score.shape[-1] // 2
    m = jnp.maximum(score[..., :a], score[..., a:])
    ea = jnp.exp(score[..., :a] - m)
    eb = jnp.exp(score[..., a:] - m)
    prob = jnp.concatenate([ea / (ea + eb), eb / (ea + eb)], axis=-1)
    return prob, bbox


if __name__ == "__main__":
    key = jax.random.PRNGKey(0)
    (k_param, k_img, k_t1, k_t2, k_vx, k_vw, k_vb, k_head) = jax.random.split(key, 8)

    params = init_params(k_param)
    im_data = jax.random.normal(k_img, (1, 64, 64, 3), jnp.float32)
    # Pre-extracted 512-channel target feature maps (target_features_given=True
    # path), e.g. 32x32 target crops at stride 16 -> 2x2 spatial.
    targets_data = (
        0.5 * jax.random.normal(k_t1, (1, 2, 2, 512), jnp.float32),
        0.5 * jax.random.normal(k_t2, (1, 2, 2, 512), jnp.float32),
    )

    # 1) conv kernel unit check vs XLA with matching bf16 inputs / f32 accumulate.
    vx = jax.random.normal(k_vx, (1, 8, 8, 16), jnp.float32)
    vw = 0.2 * jax.random.normal(k_vw, (3, 3, 16, 8), jnp.float32)
    vb = 0.1 * jax.random.normal(k_vb, (8,), jnp.float32)
    got = conv2d_nhwc(vx, vw, vb, padding=(1, 1), relu=True)
    want = jax.nn.relu(
        jax.lax.conv_general_dilated(
            vx.astype(jnp.bfloat16), vw.astype(jnp.bfloat16),
            window_strides=(1, 1), padding=((1, 1), (1, 1)),
            dimension_numbers=('NHWC', 'HWIO', 'NHWC'),
            preferred_element_type=jnp.float32) + vb)
    conv_err = float(jnp.max(jnp.abs(got - want)))
    assert conv_err < 1e-2, f"conv kernel mismatch err={conv_err}"

    # 2) fused conv + 2x2 maxpool check against the same XLA reference.
    got_p = conv2d_nhwc(vx, vw, vb, padding=(1, 1), relu=True, pool=True)
    want_p = want.reshape(1, 4, 2, 4, 2, 8).max(axis=(2, 4))
    pool_err = float(jnp.max(jnp.abs(got_p - want_p)))
    assert pool_err < 1e-2, f"pooled conv mismatch err={pool_err}"

    # 3) fused score/bbox/softmax head vs a plain-JAX reference at O(1) scale.
    kh1, kh2 = jax.random.split(k_head)
    corr_t = 0.1 * jax.random.normal(kh1, (1, 4, 4, 32), jnp.float32)
    diff_t = 0.1 * jax.random.normal(kh2, (1, 4, 4, 32), jnp.float32)
    prob_t, bbox_t = rpn_heads(corr_t, diff_t,
                               params['score_conv'], params['bbox_conv'])
    rpn_t = jnp.concatenate([corr_t, diff_t], axis=-1)
    ws_r, bs_r = params['score_conv']
    wb_r, bb_r = params['bbox_conv']
    score_r = jnp.einsum('nhwc,co->nhwo', rpn_t, ws_r[0, 0]) + bs_r
    bbox_r = jnp.einsum('nhwc,co->nhwo', rpn_t, wb_r[0, 0]) + bb_r
    a = score_r.shape[-1] // 2
    m = jnp.maximum(score_r[..., :a], score_r[..., a:])
    ea = jnp.exp(score_r[..., :a] - m)
    eb = jnp.exp(score_r[..., a:] - m)
    prob_r = jnp.concatenate([ea / (ea + eb), eb / (ea + eb)], axis=-1)
    assert float(jnp.max(jnp.abs(prob_t - prob_r))) < 2e-2, "head prob mismatch"
    assert float(jnp.max(jnp.abs(bbox_t - bbox_r))) < 2e-2, "head bbox mismatch"

    # 4) full forward.
    fwd = jax.jit(functools.partial(tdid_forward, target_features_given=True))
    rpn_cls_prob, rpn_bbox_pred, img_feats = fwd(params, targets_data, im_data)
    jax.block_until_ready((rpn_cls_prob, rpn_bbox_pred, img_feats))

    A = len(ANCHOR_SCALES) * 3
    assert img_feats.shape == (1, 4, 4, 512)
    assert rpn_cls_prob.shape == (1, 4, 4, 2 * A)
    assert rpn_bbox_pred.shape == (1, 4, 4, 4 * A)
    pair_sum = rpn_cls_prob[..., :A] + rpn_cls_prob[..., A:]
    assert jnp.allclose(pair_sum, 1.0, atol=1e-2), "softmax pairs must sum to 1"

    ref_prob, ref_bbox = head_reference(
        params, img_feats, [jnp.asarray(t, jnp.float32) for t in targets_data])
    bbox_rel = float(jnp.max(jnp.abs(rpn_bbox_pred - ref_bbox)) /
                     (jnp.max(jnp.abs(ref_bbox)) + 1e-6))
    assert bbox_rel < 8e-2, f"fused head path mismatch rel={bbox_rel}"

    print("KERNEL_OK")
</pallas_src>

<mosaic_0001>
module attributes {stable_mosaic.version = 11 : i64} {
  func.func @_conv_kernel(%arg0: i32, %arg1: i32, %arg2: memref<1x8x8x16xbf16, #tpu.memory_space<vmem>>, %arg3: memref<144x8xbf16, #tpu.memory_space<vmem>>, %arg4: memref<1x8xf32, #tpu.memory_space<vmem>>, %arg5: memref<1x4x8x8xf32, #tpu.memory_space<vmem>>, %arg6: memref<6x10x16xbf16, #tpu.memory_space<vmem>>) attributes {dimension_semantics = [#tpu.dimension_semantics<parallel>, #tpu.dimension_semantics<parallel>], iteration_bounds = array<i64: 1, 2>, scalar_prefetch = 0 : i64, scratch_operands = 1 : i64, tpu.core_type = #tpu.core_type<tc>, window_params = [{transform_indices = @transform_0, window_bounds = array<i64: 1, 8, 8, 16>}, {pipeline_mode = #tpu.pipeline_mode<synchronous>, transform_indices = @transform_1, window_bounds = array<i64: 144, 8>}, {pipeline_mode = #tpu.pipeline_mode<synchronous>, transform_indices = @transform_2, window_bounds = array<i64: 1, 8>}, {transform_indices = @transform_3, window_bounds = array<i64: 1, 4, 8, 8>}]} {
    %c4_i32 = arith.constant 4 : i32
    %0 = arith.muli %arg1, %c4_i32 : i32
    %1 = tpu.assume_multiple %0, 4 : i32
    %cst = arith.constant 0.000000e+00 : bf16
    %2 = vector.broadcast %cst : bf16 to vector<6x10x16xbf16>
    %c0 = arith.constant 0 : index
    %c0_0 = arith.constant 0 : index
    %c0_1 = arith.constant 0 : index
    %3 = vector.load %arg6[%c0, %c0_0, %c0_1] : memref<6x10x16xbf16, #tpu.memory_space<vmem>>, vector<6x10x16xbf16>
    tpu.vector_store %arg6[%c0, %c0_0, %c0_1], %2 {strides = array<i32>} : memref<6x10x16xbf16, #tpu.memory_space<vmem>>, vector<6x10x16xbf16>,
    %c0_i32 = arith.constant 0 : i32
    %4 = arith.addi %1, %c0_i32 : i32
    %c1_i32 = arith.constant 1 : i32
    %5 = arith.subi %4, %c1_i32 : i32
    %c0_i32_2 = arith.constant 0 : i32
    %6 = arith.cmpi sge, %5, %c0_i32_2 : i32
    %c8_i32 = arith.constant 8 : i32
    %7 = arith.cmpi slt, %5, %c8_i32 : i32
    %8 = arith.andi %6, %7 : i1
    %9 = arith.extui %8 : i1 to i32
    %c0_i32_3 = arith.constant 0 : i32
    %10 = arith.cmpi ne, %9, %c0_i32_3 : i32
    scf.if %10 {
      %c0_61 = arith.constant 0 : index
      %68 = arith.index_cast %5 : i32 to index
      %c0_62 = arith.constant 0 : index
      %c0_63 = arith.constant 0 : index
      %69 = vector.load %arg2[%c0_61, %68, %c0_62, %c0_63] : memref<1x8x8x16xbf16, #tpu.memory_space<vmem>>, vector<1x1x8x16xbf16>
      %70 = vector.shape_cast %69 : vector<1x1x8x16xbf16> to vector<1x8x16xbf16>
      %c0_64 = arith.constant 0 : index
      %c1_65 = arith.constant 1 : index
      %c0_66 = arith.constant 0 : index
      %71 = vector.load %arg6[%c0_64, %c1_65, %c0_66] : memref<6x10x16xbf16, #tpu.memory_space<vmem>>, vector<1x8x16xbf16>
      tpu.vector_store %arg6[%c0_64, %c1_65, %c0_66], %70 {strides = array<i32>} : memref<6x10x16xbf16, #tpu.memory_space<vmem>>, vector<1x8x16xbf16>,
    } else {
    }
    %c1_i32_4 = arith.constant 1 : i32
    %11 = arith.addi %1, %c1_i32_4 : i32
    %c1_i32_5 = arith.constant 1 : i32
    %12 = arith.subi %11, %c1_i32_5 : i32
    %c0_i32_6 = arith.constant 0 : i32
    %13 = arith.cmpi sge, %12, %c0_i32_6 : i32
    %c8_i32_7 = arith.constant 8 : i32
    %14 = arith.cmpi slt, %12, %c8_i32_7 : i32
    %15 = arith.andi %13, %14 : i1
    %16 = arith.extui %15 : i1 to i32
    %c0_i32_8 = arith.constant 0 : i32
    %17 = arith.cmpi ne, %16, %c0_i32_8 : i32
    scf.if %17 {
      %c0_61 = arith.constant 0 : index
      %68 = arith.index_cast %12 : i32 to index
      %c0_62 = arith.constant 0 : index
      %c0_63 = arith.constant 0 : index
      %69 = vector.load %arg2[%c0_61, %68, %c0_62, %c0_63] : memref<1x8x8x16xbf16, #tpu.memory_space<vmem>>, vector<1x1x8x16xbf16>
      %70 = vector.shape_cast %69 : vector<1x1x8x16xbf16> to vector<1x8x16xbf16>
      %c1_64 = arith.constant 1 : index
      %c1_65 = arith.constant 1 : index
      %c0_66 = arith.constant 0 : index
      %71 = vector.load %arg6[%c1_64, %c1_65, %c0_66] : memref<6x10x16xbf16, #tpu.memory_space<vmem>>, vector<1x8x16xbf16>
      tpu.vector_store %arg6[%c1_64, %c1_65, %c0_66], %70 {strides = array<i32>} : memref<6x10x16xbf16, #tpu.memory_space<vmem>>, vector<1x8x16xbf16>,
    } else {
    }
    %c2_i32 = arith.constant 2 : i32
    %18 = arith.addi %1, %c2_i32 : i32
    %c1_i32_9 = arith.constant 1 : i32
    %19 = arith.subi %18, %c1_i32_9 : i32
    %c0_i32_10 = arith.constant 0 : i32
    %20 = arith.cmpi sge, %19, %c0_i32_10 : i32
    %c8_i32_11 = arith.constant 8 : i32
    %21 = arith.cmpi slt, %19, %c8_i32_11 : i32
    %22 = arith.andi %20, %21 : i1
    %23 = arith.extui %22 : i1 to i32
    %c0_i32_12 = arith.constant 0 : i32
    %24 = arith.cmpi ne, %23, %c0_i32_12 : i32
    scf.if %24 {
      %c0_61 = arith.constant 0 : index
      %68 = arith.index_cast %19 : i32 to index
      %c0_62 = arith.constant 0 : index
      %c0_63 = arith.constant 0 : index
      %69 = vector.load %arg2[%c0_61, %68, %c0_62, %c0_63] : memref<1x8x8x16xbf16, #tpu.memory_space<vmem>>, vector<1x1x8x16xbf16>
      %70 = vector.shape_cast %69 : vector<1x1x8x16xbf16> to vector<1x8x16xbf16>
      %c2_64 = arith.constant 2 : index
      %c1_65 = arith.constant 1 : index
      %c0_66 = arith.constant 0 : index
      %71 = vector.load %arg6[%c2_64, %c1_65, %c0_66] : memref<6x10x16xbf16, #tpu.memory_space<vmem>>, vector<1x8x16xbf16>
      tpu.vector_store %arg6[%c2_64, %c1_65, %c0_66], %70 {strides = array<i32>} : memref<6x10x16xbf16, #tpu.memory_space<vmem>>, vector<1x8x16xbf16>,
    } else {
    }
    %c3_i32 = arith.constant 3 : i32
    %25 = arith.addi %1, %c3_i32 : i32
    %c1_i32_13 = arith.constant 1 : i32
    %26 = arith.subi %25, %c1_i32_13 : i32
    %c0_i32_14 = arith.constant 0 : i32
    %27 = arith.cmpi sge, %26, %c0_i32_14 : i32
    %c8_i32_15 = arith.constant 8 : i32
    %28 = arith.cmpi slt, %26, %c8_i32_15 : i32
    %29 = arith.andi %27, %28 : i1
    %30 = arith.extui %29 : i1 to i32
    %c0_i32_16 = arith.constant 0 : i32
    %31 = arith.cmpi ne, %30, %c0_i32_16 : i32
    scf.if %31 {
      %c0_61 = arith.constant 0 : index
      %68 = arith.index_cast %26 : i32 to index
      %c0_62 = arith.constant 0 : index
      %c0_63 = arith.constant 0 : index
      %69 = vector.load %arg2[%c0_61, %68, %c0_62, %c0_63] : memref<1x8x8x16xbf16, #tpu.memory_space<vmem>>, vector<1x1x8x16xbf16>
      %70 = vector.shape_cast %69 : vector<1x1x8x16xbf16> to vector<1x8x16xbf16>
      %c3 = arith.constant 3 : index
      %c1_64 = arith.constant 1 : index
      %c0_65 = arith.constant 0 : index
      %71 = vector.load %arg6[%c3, %c1_64, %c0_65] : memref<6x10x16xbf16, #tpu.memory_space<vmem>>, vector<1x8x16xbf16>
      tpu.vector_store %arg6[%c3, %c1_64, %c0_65], %70 {strides = array<i32>} : memref<6x10x16xbf16, #tpu.memory_space<vmem>>, vector<1x8x16xbf16>,
    } else {
    }
    %c4_i32_17 = arith.constant 4 : i32
    %32 = arith.addi %1, %c4_i32_17 : i32
    %c1_i32_18 = arith.constant 1 : i32
    %33 = arith.subi %32, %c1_i32_18 : i32
    %c0_i32_19 = arith.constant 0 : i32
    %34 = arith.cmpi sge, %33, %c0_i32_19 : i32
    %c8_i32_20 = arith.constant 8 : i32
    %35 = arith.cmpi slt, %33, %c8_i32_20 : i32
    %36 = arith.andi %34, %35 : i1
    %37 = arith.extui %36 : i1 to i32
    %c0_i32_21 = arith.constant 0 : i32
    %38 = arith.cmpi ne, %37, %c0_i32_21 : i32
    scf.if %38 {
      %c0_61 = arith.constant 0 : index
      %68 = arith.index_cast %33 : i32 to index
      %c0_62 = arith.constant 0 : index
      %c0_63 = arith.constant 0 : index
      %69 = vector.load %arg2[%c0_61, %68, %c0_62, %c0_63] : memref<1x8x8x16xbf16, #tpu.memory_space<vmem>>, vector<1x1x8x16xbf16>
      %70 = vector.shape_cast %69 : vector<1x1x8x16xbf16> to vector<1x8x16xbf16>
      %c4 = arith.constant 4 : index
      %c1_64 = arith.constant 1 : index
      %c0_65 = arith.constant 0 : index
      %71 = vector.load %arg6[%c4, %c1_64, %c0_65] : memref<6x10x16xbf16, #tpu.memory_space<vmem>>, vector<1x8x16xbf16>
      tpu.vector_store %arg6[%c4, %c1_64, %c0_65], %70 {strides = array<i32>} : memref<6x10x16xbf16, #tpu.memory_space<vmem>>, vector<1x8x16xbf16>,
    } else {
    }
    %c5_i32 = arith.constant 5 : i32
    %39 = arith.addi %1, %c5_i32 : i32
    %c1_i32_22 = arith.constant 1 : i32
    %40 = arith.subi %39, %c1_i32_22 : i32
    %c0_i32_23 = arith.constant 0 : i32
    %41 = arith.cmpi sge, %40, %c0_i32_23 : i32
    %c8_i32_24 = arith.constant 8 : i32
    %42 = arith.cmpi slt, %40, %c8_i32_24 : i32
    %43 = arith.andi %41, %42 : i1
    %44 = arith.extui %43 : i1 to i32
    %c0_i32_25 = arith.constant 0 : i32
    %45 = arith.cmpi ne, %44, %c0_i32_25 : i32
    scf.if %45 {
      %c0_61 = arith.constant 0 : index
      %68 = arith.index_cast %40 : i32 to index
      %c0_62 = arith.constant 0 : index
      %c0_63 = arith.constant 0 : index
      %69 = vector.load %arg2[%c0_61, %68, %c0_62, %c0_63] : memref<1x8x8x16xbf16, #tpu.memory_space<vmem>>, vector<1x1x8x16xbf16>
      %70 = vector.shape_cast %69 : vector<1x1x8x16xbf16> to vector<1x8x16xbf16>
      %c5 = arith.constant 5 : index
      %c1_64 = arith.constant 1 : index
      %c0_65 = arith.constant 0 : index
      %71 = vector.load %arg6[%c5, %c1_64, %c0_65] : memref<6x10x16xbf16, #tpu.memory_space<vmem>>, vector<1x8x16xbf16>
      tpu.vector_store %arg6[%c5, %c1_64, %c0_65], %70 {strides = array<i32>} : memref<6x10x16xbf16, #tpu.memory_space<vmem>>, vector<1x8x16xbf16>,
    } else {
    }
    %c0_26 = arith.constant 0 : index
    %c0_27 = arith.constant 0 : index
    %c0_28 = arith.constant 0 : index
    %46 = vector.load %arg6[%c0_26, %c0_27, %c0_28] : memref<6x10x16xbf16, #tpu.memory_space<vmem>>, vector<4x8x16xbf16>
    %c0_29 = arith.constant 0 : index
    %c1 = arith.constant 1 : index
    %c0_30 = arith.constant 0 : index
    %47 = vector.load %arg6[%c0_29, %c1, %c0_30] : memref<6x10x16xbf16, #tpu.memory_space<vmem>>, vector<4x8x16xbf16>
    %c0_31 = arith.constant 0 : index
    %c2 = arith.constant 2 : index
    %c0_32 = arith.constant 0 : index
    %48 = vector.load %arg6[%c0_31, %c2, %c0_32] : memref<6x10x16xbf16, #tpu.memory_space<vmem>>, vector<4x8x16xbf16>
    %c1_33 = arith.constant 1 : index
    %c0_34 = arith.constant 0 : index
    %c0_35 = arith.constant 0 : index
    %49 = vector.load %arg6[%c1_33, %c0_34, %c0_35] : memref<6x10x16xbf16, #tpu.memory_space<vmem>>, vector<4x8x16xbf16>
    %c1_36 = arith.constant 1 : index
    %c1_37 = arith.constant 1 : index
    %c0_38 = arith.constant 0 : index
    %50 = vector.load %arg6[%c1_36, %c1_37, %c0_38] : memref<6x10x16xbf16, #tpu.memory_space<vmem>>, vector<4x8x16xbf16>
    %c1_39 = arith.constant 1 : index
    %c2_40 = arith.constant 2 : index
    %c0_41 = arith.constant 0 : index
    %51 = vector.load %arg6[%c1_39, %c2_40, %c0_41] : memref<6x10x16xbf16, #tpu.memory_space<vmem>>, vector<4x8x16xbf16>
    %c2_42 = arith.constant 2 : index
    %c0_43 = arith.constant 0 : index
    %c0_44 = arith.constant 0 : index
    %52 = vector.load %arg6[%c2_42, %c0_43, %c0_44] : memref<6x10x16xbf16, #tpu.memory_space<vmem>>, vector<4x8x16xbf16>
    %c2_45 = arith.constant 2 : index
    %c1_46 = arith.constant 1 : index
    %c0_47 = arith.constant 0 : index
    %53 = vector.load %arg6[%c2_45, %c1_46, %c0_47] : memref<6x10x16xbf16, #tpu.memory_space<vmem>>, vector<4x8x16xbf16>
    %c2_48 = arith.constant 2 : index
    %c2_49 = arith.constant 2 : index
    %c0_50 = arith.constant 0 : index
    %54 = vector.load %arg6[%c2_48, %c2_49, %c0_50] : memref<6x10x16xbf16, #tpu.memory_space<vmem>>, vector<4x8x16xbf16>
    %55 = tpu.concatenate %46, %47, %48, %49, %50, %51, %52, %53, %54 in 2 : vector<4x8x16xbf16>, vector<4x8x16xbf16>, vector<4x8x16xbf16>, vector<4x8x16xbf16>, vector<4x8x16xbf16>, vector<4x8x16xbf16>, vector<4x8x16xbf16>, vector<4x8x16xbf16>, vector<4x8x16xbf16> -> vector<4x8x144xbf16>
    %56 = vector.shape_cast %55 : vector<4x8x144xbf16> to vector<32x144xbf16>
    %c0_51 = arith.constant 0 : index
    %c0_52 = arith.constant 0 : index
    %57 = vector.load %arg3[%c0_51, %c0_52] : memref<144x8xbf16, #tpu.memory_space<vmem>>, vector<144x8xbf16>
    %cst_53 = arith.constant dense<0.000000e+00> : vector<32x8xf32>
    %58 = tpu.matmul %56, %57, %cst_53 {dimension_numbers = #tpu.dot_dimension_numbers<[1], [0], [0], [1], [0, 0, 1, 1], [], []>} : vector<32x144xbf16>, vector<144x8xbf16>, vector<32x8xf32> -> vector<32x8xf32>
    %c0_54 = arith.constant 0 : index
    %c0_55 = arith.constant 0 : index
    %59 = vector.load %arg4[%c0_54, %c0_55] : memref<1x8xf32, #tpu.memory_space<vmem>>, vector<1x8xf32>
    %60 = vector.broadcast %59 : vector<1x8xf32> to vector<32x8xf32>
    %61 = arith.addf %58, %60 : vector<32x8xf32>
    %62 = vector.shape_cast %61 : vector<32x8xf32> to vector<4x8x8xf32>
    %cst_56 = arith.constant 0.000000e+00 : f32
    %63 = vector.broadcast %cst_56 : f32 to vector<4x8x8xf32>
    %64 = arith.maximumf %62, %63 : vector<4x8x8xf32>
    %c0_57 = arith.constant 0 : index
    %c0_58 = arith.constant 0 : index
    %c0_59 = arith.constant 0 : index
    %c0_60 = arith.constant 0 : index
    %65 = vector.load %arg5[%c0_57, %c0_58, %c0_59, %c0_60] : memref<1x4x8x8xf32, #tpu.memory_space<vmem>>, vector<1x4x8x8xf32>
    %66 = vector.shape_cast %65 : vector<1x4x8x8xf32> to vector<4x8x8xf32>
    %67 = vector.shape_cast %64 : vector<4x8x8xf32> to vector<1x4x8x8xf32>
    tpu.vector_store %arg5[%c0_57, %c0_58, %c0_59, %c0_60], %67 {strides = array<i32>} : memref<1x4x8x8xf32, #tpu.memory_space<vmem>>, vector<1x4x8x8xf32>,
    return
  }
  func.func @transform_0(%arg0: i32, %arg1: i32) -> (i32, i32, i32, i32) {
    %c0_i32 = arith.constant 0 : i32
    %c0_i32_0 = arith.constant 0 : i32
    %c0_i32_1 = arith.constant 0 : i32
    %c0_i32_2 = arith.constant 0 : i32
    return %arg0, %c0_i32, %c0_i32_0, %c0_i32_1 : i32, i32, i32, i32
  }
  func.func @transform_1(%arg0: i32, %arg1: i32) -> (i32, i32) {
    %c0_i32 = arith.constant 0 : i32
    %c0_i32_0 = arith.constant 0 : i32
    %c0_i32_1 = arith.constant 0 : i32
    return %c0_i32, %c0_i32_0 : i32, i32
  }
  func.func @transform_2(%arg0: i32, %arg1: i32) -> (i32, i32) {
    %c0_i32 = arith.constant 0 : i32
    %c0_i32_0 = arith.constant 0 : i32
    %c0_i32_1 = arith.constant 0 : i32
    return %c0_i32, %c0_i32_0 : i32, i32
  }
  func.func @transform_3(%arg0: i32, %arg1: i32) -> (i32, i32, i32, i32) {
    %c0_i32 = arith.constant 0 : i32
    %c0_i32_0 = arith.constant 0 : i32
    %c0_i32_1 = arith.constant 0 : i32
    return %arg0, %arg1, %c0_i32, %c0_i32_0 : i32, i32, i32, i32
  }
}

</mosaic_0001>

<llo_original>
// kernel: tpu_custom_call.1
$region0: #{tpu_custom_call.1}
  #allocation0 [shape = 'u32[]', space=smem, size = 0x4, offset = 0x4, fixed_abs, tag = 'smem constant byte address 0x4 - core index']
  #allocation1 [shape = 'u32[144,128]{1,0:T(1,128)}', space=vmem, size = 0x12000, scoped, tag = 'internal scratch']
  #allocation2 [shape = 'bf16[6,10,16]{2,1,0:T(8,128)(2,1)}', space=vmem, size = 0x6000, scoped, tag = 'scratch operand']
  %s0 = inlined_call_operand.vmem [shape: bf16[1,8,8,16], index: 0, kind: input, shape index: {}]
  %s1 = inlined_call_operand.vmem [shape: bf16[144,8], index: 1, kind: input, shape index: {}]
  %s2 = inlined_call_operand.vmem [shape: f32[1,8], index: 2, kind: input, shape index: {}]
  %s3 = inlined_call_operand.hbm [shape: f32[1,8,8,8], index: 3, kind: output, shape index: {}]
  %s4 = sld [smem:[#allocation0]]
  $region69: #{tpu_custom_call.1} parent=0
    _
  %s6 = ssub.s32 1, %s4
  %s7 = scalar_select 0, %s6, %s4
  $region1: #{tpu_custom_call.1} parent=0
    #allocation3 [shape = 'u8[32768]{0}', space=vmem, size = 0x8000, scoped, tag = 'output window, operand 0']
    #allocation4 [shape = 's32[2]{0}', space=sflag, size = 0x8, scoped, tag = 'scoped memory for tpu_custom_call.1']
    %8 = vsyncpa [#allocation4], 0
    %s9 = scalar_lea.sflag [#allocation4], 1
    %10 = vsyncpa %s9, 0
    loop: start=0, step=1, limit=4
    $region2: #{tpu_custom_call.1} parent=1 // loop_pre_header
      _
    $region3: #{tpu_custom_call.1} parent=1 // loop_header
      %s12 = sphi 0, %s16
      %p13 = scmp.ge.s32.totalorder %s12, 4
      %s19 = sphi 0, %s31
      %s20 = sphi 0, %s27
      %s21 = sphi 0, %s19
      %s22 = sphi 0, %s20
      %s23 = sphi 0, %s21
      %s24 = sphi 0, %s22
      %s34 = sphi 0, %s36
      %s37 = sphi 0, %s34
      %s38 = sphi 0, %s37
      %s54 = sphi 0, %s38
      %s58 = sphi 0, %s58
      %s60 = sphi 0, %s58
      %s61 = sphi 0, %s60
      %s75 = sphi 0, %s61
      %s79 = sphi 0, %s79
      %s81 = sphi 0, %s79
      %s82 = sphi 0, %s81
      %s96 = sphi 0, %s82
      %s104 = sphi 0, %s106
      %s107 = sphi 0, %s104
      %s108 = sphi 0, %s107
      %s124 = sphi 0, %s108
    $region4: #{tpu_custom_call.1} parent=1 // loop_header_branch
      %15 = sbr.rel (%p13) target = $region8
    $region5: #{tpu_custom_call.1} parent=1 // loop_body
      %s17 = ssub.s32 %s12, 1
      %s18 = ssub.s32 %s12, 2
      %s25 = sadd.s32 1, %s20
      %p26 = scmp.ge.s32.totalorder %s25, 2
      %s27 = scalar_select %p26, 0, %s25
      %s28 = sadd.s32 1, %s19
      %s29 = scalar_select %p26, %s28, %s19
      %p30 = scmp.ge.s32.totalorder %s29, 1
      %s31 = scalar_select %p30, 0, %s29
      %s32 = ssub.s32 %s19, %s31
      %p33 = scmp.eq.s32.totalorder %s32, 0
      %s35 = sadd.s32 %s34, 1
      %s36 = scalar_select %p33, %s34, %s35
      %p39 = pneg %p33
      %p40 = scmp.eq.s32.totalorder %s12, 1
      %p41 = por %p39, %p40
      %p42 = scmp.ne.s32.totalorder %s34, %s37
      %p43 = scmp.eq.s32.totalorder %s12, 0
      %p44 = por %p42, %p43
      %p45 = scmp.ne.s32.totalorder %s34, %s37
      %p46 = scmp.eq.s32.totalorder %s17, 1
      %p47 = por %p45, %p46
      %p48 = scmp.ne.s32.totalorder %s37, %s38
      %p49 = scmp.eq.s32.totalorder %s17, 0
      %p50 = por %p48, %p49
      %p51 = scmp.ne.s32.totalorder %s37, %s38
      %p52 = scmp.eq.s32.totalorder %s18, 1
      %p53 = por %p51, %p52
      %p55 = scmp.ne.s32.totalorder %s38, %s54
      %p56 = scmp.eq.s32.totalorder %s18, 0
      %p57 = por %p55, %p56
      %s59 = sadd.s32 %s58, 1
      %p62 = scmp.eq.s32.totalorder %s12, 1
      %p63 = scmp.ne.s32.totalorder %s58, %s60
      %p64 = scmp.eq.s32.totalorder %s12, 0
      %p65 = por %p63, %p64
      %p66 = scmp.ne.s32.totalorder %s58, %s60
      %p67 = scmp.eq.s32.totalorder %s17, 1
      %p68 = por %p66, %p67
      %p69 = scmp.ne.s32.totalorder %s60, %s61
      %p70 = scmp.eq.s32.totalorder %s17, 0
      %p71 = por %p69, %p70
      %p72 = scmp.ne.s32.totalorder %s60, %s61
      %p73 = scmp.eq.s32.totalorder %s18, 1
      %p74 = por %p72, %p73
      %p76 = scmp.ne.s32.totalorder %s61, %s75
      %p77 = scmp.eq.s32.totalorder %s18, 0
      %p78 = por %p76, %p77
      %s80 = sadd.s32 %s79, 1
      %p83 = scmp.eq.s32.totalorder %s12, 1
      %p84 = scmp.ne.s32.totalorder %s79, %s81
      %p85 = scmp.eq.s32.totalorder %s12, 0
      %p86 = por %p84, %p85
      %p87 = scmp.ne.s32.totalorder %s79, %s81
      %p88 = scmp.eq.s32.totalorder %s17, 1
      %p89 = por %p87, %p88
      %p90 = scmp.ne.s32.totalorder %s81, %s82
      %p91 = scmp.eq.s32.totalorder %s17, 0
      %p92 = por %p90, %p91
      %p93 = scmp.ne.s32.totalorder %s81, %s82
      %p94 = scmp.eq.s32.totalorder %s18, 1
      %p95 = por %p93, %p94
      %p97 = scmp.ne.s32.totalorder %s82, %s96
      %p98 = scmp.eq.s32.totalorder %s18, 0
      %p99 = por %p97, %p98
      %s100 = ssub.s32 %s19, %s31
      %s101 = ssub.s32 %s20, %s27
      %s102 = sor.u32 %s100, %s101
      %p103 = scmp.eq.s32.totalorder %s102, 0
      %s105 = sadd.s32 %s104, 1
      %s106 = scalar_select %p103, %s104, %s105
      %p109 = pneg %p103
      %p110 = scmp.eq.s32.totalorder %s12, 1
      %p111 = por %p109, %p110
      %p112 = scmp.ne.s32.totalorder %s104, %s107
      %p113 = scmp.eq.s32.totalorder %s12, 0
      %p114 = por %p112, %p113
      %p115 = scmp.ne.s32.totalorder %s104, %s107
      %p116 = scmp.eq.s32.totalorder %s17, 1
      %p117 = por %p115, %p116
      %p118 = scmp.ne.s32.totalorder %s107, %s108
      %p119 = scmp.eq.s32.totalorder %s17, 0
      %p120 = por %p118, %p119
      %p121 = scmp.ne.s32.totalorder %s107, %s108
      %p122 = scmp.eq.s32.totalorder %s18, 1
      %p123 = por %p121, %p122
      %p125 = scmp.ne.s32.totalorder %s108, %s124
      %p126 = scmp.eq.s32.totalorder %s18, 0
      %p127 = por %p125, %p126
      %p128 = scmp.le.s32.totalorder 1, %s12
      %p129 = scmp.lt.s32.totalorder %s12, 3
      %p130 = pnand %p128, %p129
      %p131 = pneg %p130
      // Predicated region
      $region9: #{tpu_custom_call.1} parent=5 // pred_check
        _
      $region10: #{tpu_custom_call.1} parent=5 // pred_check_branch
        %133 = sbr.rel (%p130) target = $region12
      $region11: #{tpu_custom_call.1} parent=5 // pred_region
        %s134 = ssub.s32 %s12, 1
        // Predicated region
        $region13: #{tpu_custom_call.1} parent=11 // pred_check
          %p135 = pneg %p50
        $region14: #{tpu_custom_call.1} parent=11 // pred_check_branch
          %137 = sbr.rel (%p135) target = $region16
        $region15: #{tpu_custom_call.1} parent=11 // pred_region
          %p138 = scmp.lt.s32.totalorder %s21, 0
          %s139 = scalar_select %p138, %s21, 0
          %s140 = smul.addr %s139, 8
          %s141 = smul.addr %s140, 4
          %s142 = scalar_lea.vmem %s0, %s141
        $region16: #{tpu_custom_call.1} parent=11 // pred_fallthru
          _
        // Predicated region
        $region17: #{tpu_custom_call.1} parent=11 // pred_check
          %p143 = pneg %p71
        $region18: #{tpu_custom_call.1} parent=11 // pred_check_branch
          %145 = sbr.rel (%p143) target = $region20
        $region19: #{tpu_custom_call.1} parent=11 // pred_region
          _
        $region20: #{tpu_custom_call.1} parent=11 // pred_fallthru
          _
        // Predicated region
        $region21: #{tpu_custom_call.1} parent=11 // pred_check
          %p146 = pneg %p92
        $region22: #{tpu_custom_call.1} parent=11 // pred_check_branch
          %148 = sbr.rel (%p146) target = $region24
        $region23: #{tpu_custom_call.1} parent=11 // pred_region
          _
        $region24: #{tpu_custom_call.1} parent=11 // pred_fallthru
          _
      $region12: #{tpu_custom_call.1} parent=5 // pred_fallthru
        _
      %p149 = scmp.lt.s32.totalorder %s12, 2
      // Predicated region
      $region25: #{tpu_custom_call.1} parent=5 // pred_check
        %p150 = pneg %p149
      $region26: #{tpu_custom_call.1} parent=5 // pred_check_branch
        %152 = sbr.rel (%p150) target = $region28
      $region27: #{tpu_custom_call.1} parent=5 // pred_region
        _
      $region28: #{tpu_custom_call.1} parent=5 // pred_fallthru
        _
      %p153 = scmp.le.s32.totalorder 1, %s12
      %p154 = scmp.lt.s32.totalorder %s12, 3
      %p155 = pnand %p153, %p154
      %p156 = pneg %p155
      // Predicated region
      $region29: #{tpu_custom_call.1} parent=5 // pred_check
        _
      $region30: #{tpu_custom_call.1} parent=5 // pred_check_branch
        %158 = sbr.rel (%p155) target = $region32
      $region31: #{tpu_custom_call.1} parent=5 // pred_region
        %s159 = ssub.s32 %s12, 1
        %p160 = scmp.lt.s32.totalorder %s21, 0
        %s161 = scalar_select %p160, %s21, 0
        %s162 = smul.addr %s161, 8
        %s163 = smul.addr %s162, 4
        %s164 = scalar_lea.vmem %s0, %s163
        %p165 = pneg %p50
        %p166 = pneg %p47
        %p167 = pneg %p71
        %p168 = pneg %p68
        %p169 = pneg %p92
        %p170 = pneg %p89
        %p171 = pneg %p120
        %p172 = pneg %p117
        %s173 = sand.u32 %s107, 1
        %s174 = scalar_lea.sflag [#allocation4], %s173
        %s175 = sand.u32 %s107, 1
        %s176 = smul.addr %s175, 32
        %s177 = scalar_lea.vmem [#allocation3], %s176
        %p178 = scmp.lt.s32.totalorder %s21, 0
        %s179 = scalar_select %p178, %s21, 0
        %s180 = smul.addr %s179, 8
        %s181 = smul.addr %s180, 4
        %s182 = scalar_lea.vmem %s0, %s181
        %s183 = smul.u32 4, %s22
        %s185 = smul.u32 %s22, 4
        %vm186 = vcmask 125952
        %187 = vst.msk [vmem:[#allocation2] sm:$0xf] %vm186, 0
        %vm188 = vcmask 122880
        %189 = vst.msk [vmem:[#allocation2 + $0x4] sm:$0x1] %vm188, 0
        %190 = vst.msk [vmem:[#allocation2 + $0x8] sm:$0xf] %vm186, 0
        %191 = vst.msk [vmem:[#allocation2 + $0xc] sm:$0x1] %vm188, 0
        %192 = vst.msk [vmem:[#allocation2 + $0x10] sm:$0xf] %vm186, 0
        %193 = vst.msk [vmem:[#allocation2 + $0x14] sm:$0x1] %vm188, 0
        %194 = vst.msk [vmem:[#allocation2 + $0x18] sm:$0xf] %vm186, 0
        %195 = vst.msk [vmem:[#allocation2 + $0x1c] sm:$0x1] %vm188, 0
        %196 = vst.msk [vmem:[#allocation2 + $0x20] sm:$0xf] %vm186, 0
        %197 = vst.msk [vmem:[#allocation2 + $0x24] sm:$0x1] %vm188, 0
        %198 = vst.msk [vmem:[#allocation2 + $0x28] sm:$0xf] %vm186, 0
        %199 = vst.msk [vmem:[#allocation2 + $0x2c] sm:$0x1] %vm188, 0
        %s200 = sadd.s32 %s185, 4294967295
        %p201 = scmp.ge.s32.totalorder %s200, 0
        %p202 = scmp.lt.s32.totalorder %s200, 8
        %p203 = pnand %p201, %p202
        %p204 = pneg %p203
        // Predicated region
        $region33: #{tpu_custom_call.1} parent=31 // pred_check
          _
        $region34: #{tpu_custom_call.1} parent=31 // pred_check_branch
          %206 = sbr.rel (%p203) target = $region36
        $region35: #{tpu_custom_call.1} parent=31 // pred_region
          %s207 = smul.addr %s200, 4
          %s208 = scalar_lea.vmem %s182, %s207
          %v209 = vld [vmem:[%s208] sm:$0xf]
          %v211 = vshrl.u32 %v209, 16
          %v213 = vrot.slane %v211, 7
          %v214 = vshll.u32 %v209, 16
          %v216 = vor.u32 %v213, %v214
          %v217 = vrot.slane %v213, 4
          %vm220 = vcmask 125952
          %vm221 = vsmask.f32 7938
          %vm222 = vmand %vm220, %vm221
          %v223 = vld [vmem:[#allocation2] sm:$0xf]
          %v224 = vsel %vm222, %v216, %v223
          %225 = vst [vmem:[#allocation2] sm:$0xf] %v224
          %vm226 = vcmask 122880
          %vm227 = vsmask.f32 256
          %vm228 = vmand %vm226, %vm227
          %v229 = vld [vmem:[#allocation2 + $0x4] sm:$0x1]
          %v230 = vsel %vm228, %v217, %v229
          %231 = vst [vmem:[#allocation2 + $0x4] sm:$0x1] %v230
        $region36: #{tpu_custom_call.1} parent=31 // pred_fallthru
          _
        %p232 = scmp.ge.s32.totalorder %s185, 0
        %p233 = scmp.lt.s32.totalorder %s185, 8
        %p234 = pnand %p232, %p233
        %p235 = pneg %p234
        // Predicated region
        $region37: #{tpu_custom_call.1} parent=31 // pred_check
          _
        $region38: #{tpu_custom_call.1} parent=31 // pred_check_branch
          %237 = sbr.rel (%p234) target = $region40
        $region39: #{tpu_custom_call.1} parent=31 // pred_region
          %s238 = smul.addr %s185, 4
          %s239 = scalar_lea.vmem %s182, %s238
          %v240 = vld [vmem:[%s239] sm:$0xf]
          %v242 = vshrl.u32 %v240, 16
          %v244 = vrot.slane %v242, 7
          %v245 = vshll.u32 %v240, 16
          %v247 = vor.u32 %v244, %v245
          %v248 = vrot.slane %v244, 4
          %s251 = scalar_lea.vmem [#allocation2], 8
          %vm252 = vcmask 125952
          %vm253 = vsmask.f32 7938
          %vm254 = vmand %vm252, %vm253
          %v255 = vld [vmem:[%s251] sm:$0xf]
          %v256 = vsel %vm254, %v247, %v255
          %257 = vst [vmem:[%s251] sm:$0xf] %v256
          %vm258 = vcmask 122880
          %vm259 = vsmask.f32 256
          %vm260 = vmand %vm258, %vm259
          %v261 = vld [vmem:[%s251 + $0x4] sm:$0x1]
          %v262 = vsel %vm260, %v248, %v261
          %263 = vst [vmem:[%s251 + $0x4] sm:$0x1] %v262
        $region40: #{tpu_custom_call.1} parent=31 // pred_fallthru
          _
        %s264 = sadd.s32 %s185, 1
        %p265 = scmp.ge.s32.totalorder %s264, 0
        %p266 = scmp.lt.s32.totalorder %s264, 8
        %p267 = pnand %p265, %p266
        %p268 = pneg %p267
        // Predicated region
        $region41: #{tpu_custom_call.1} parent=31 // pred_check
          _
        $region42: #{tpu_custom_call.1} parent=31 // pred_check_branch
          %270 = sbr.rel (%p267) target = $region44
        $region43: #{tpu_custom_call.1} parent=31 // pred_region
          %s271 = smul.addr %s264, 4
          %s272 = scalar_lea.vmem %s182, %s271
          %v273 = vld [vmem:[%s272] sm:$0xf]
          %v275 = vshrl.u32 %v273, 16
          %v277 = vrot.slane %v275, 7
          %v278 = vshll.u32 %v273, 16
          %v280 = vor.u32 %v277, %v278
          %v281 = vrot.slane %v277, 4
          %s284 = scalar_lea.vmem [#allocation2], 16
          %vm285 = vcmask 125952
          %vm286 = vsmask.f32 7938
          %vm287 = vmand %vm285, %vm286
          %v288 = vld [vmem:[%s284] sm:$0xf]
          %v289 = vsel %vm287, %v280, %v288
          %290 = vst [vmem:[%s284] sm:$0xf] %v289
          %vm291 = vcmask 122880
          %vm292 = vsmask.f32 256
          %vm293 = vmand %vm291, %vm292
          %v294 = vld [vmem:[%s284 + $0x4] sm:$0x1]
          %v295 = vsel %vm293, %v281, %v294
          %296 = vst [vmem:[%s284 + $0x4] sm:$0x1] %v295
        $region44: #{tpu_custom_call.1} parent=31 // pred_fallthru
          _
        %s297 = sadd.s32 %s185, 2
        %p298 = scmp.ge.s32.totalorder %s297, 0
        %p299 = scmp.lt.s32.totalorder %s297, 8
        %p300 = pnand %p298, %p299
        %p301 = pneg %p300
        // Predicated region
        $region45: #{tpu_custom_call.1} parent=31 // pred_check
          _
        $region46: #{tpu_custom_call.1} parent=31 // pred_check_branch
          %303 = sbr.rel (%p300) target = $region48
        $region47: #{tpu_custom_call.1} parent=31 // pred_region
          %s304 = smul.addr %s297, 4
          %s305 = scalar_lea.vmem %s182, %s304
          %v306 = vld [vmem:[%s305] sm:$0xf]
          %v308 = vshrl.u32 %v306, 16
          %v310 = vrot.slane %v308, 7
          %v311 = vshll.u32 %v306, 16
          %v313 = vor.u32 %v310, %v311
          %v314 = vrot.slane %v310, 4
          %s317 = scalar_lea.vmem [#allocation2], 24
          %vm318 = vcmask 125952
          %vm319 = vsmask.f32 7938
          %vm320 = vmand %vm318, %vm319
          %v321 = vld [vmem:[%s317] sm:$0xf]
          %v322 = vsel %vm320, %v313, %v321
          %323 = vst [vmem:[%s317] sm:$0xf] %v322
          %vm324 = vcmask 122880
          %vm325 = vsmask.f32 256
          %vm326 = vmand %vm324, %vm325
          %v327 = vld [vmem:[%s317 + $0x4] sm:$0x1]
          %v328 = vsel %vm326, %v314, %v327
          %329 = vst [vmem:[%s317 + $0x4] sm:$0x1] %v328
        $region48: #{tpu_custom_call.1} parent=31 // pred_fallthru
          _
        %s330 = sadd.s32 %s185, 3
        %p331 = scmp.ge.s32.totalorder %s330, 0
        %p332 = scmp.lt.s32.totalorder %s330, 8
        %p333 = pnand %p331, %p332
        %p334 = pneg %p333
        // Predicated region
        $region49: #{tpu_custom_call.1} parent=31 // pred_check
          _
        $region50: #{tpu_custom_call.1} parent=31 // pred_check_branch
          %336 = sbr.rel (%p333) target = $region52
        $region51: #{tpu_custom_call.1} parent=31 // pred_region
          %s337 = smul.addr %s330, 4
          %s338 = scalar_lea.vmem %s182, %s337
          %v339 = vld [vmem:[%s338] sm:$0xf]
          %v341 = vshrl.u32 %v339, 16
          %v343 = vrot.slane %v341, 7
          %v344 = vshll.u32 %v339, 16
          %v346 = vor.u32 %v343, %v344
          %v347 = vrot.slane %v343, 4
          %s350 = scalar_lea.vmem [#allocation2], 32
          %vm351 = vcmask 125952
          %vm352 = vsmask.f32 7938
          %vm353 = vmand %vm351, %vm352
          %v354 = vld [vmem:[%s350] sm:$0xf]
          %v355 = vsel %vm353, %v346, %v354
          %356 = vst [vmem:[%s350] sm:$0xf] %v355
          %vm357 = vcmask 122880
          %vm358 = vsmask.f32 256
          %vm359 = vmand %vm357, %vm358
          %v360 = vld [vmem:[%s350 + $0x4] sm:$0x1]
          %v361 = vsel %vm359, %v347, %v360
          %362 = vst [vmem:[%s350 + $0x4] sm:$0x1] %v361
        $region52: #{tpu_custom_call.1} parent=31 // pred_fallthru
          _
        %s363 = sadd.s32 %s185, 4
        %p364 = scmp.ge.s32.totalorder %s363, 0
        %p365 = scmp.lt.s32.totalorder %s363, 8
        %p366 = pnand %p364, %p365
        %p367 = pneg %p366
        // Predicated region
        $region53: #{tpu_custom_call.1} parent=31 // pred_check
          _
        $region54: #{tpu_custom_call.1} parent=31 // pred_check_branch
          %369 = sbr.rel (%p366) target = $region56
        $region55: #{tpu_custom_call.1} parent=31 // pred_region
          %s370 = smul.addr %s363, 4
          %s371 = scalar_lea.vmem %s182, %s370
          %v372 = vld [vmem:[%s371] sm:$0xf]
          %v374 = vshrl.u32 %v372, 16
          %v376 = vrot.slane %v374, 7
          %v377 = vshll.u32 %v372, 16
          %v379 = vor.u32 %v376, %v377
          %v380 = vrot.slane %v376, 4
          %s383 = scalar_lea.vmem [#allocation2], 40
          %vm384 = vcmask 125952
          %vm385 = vsmask.f32 7938
          %vm386 = vmand %vm384, %vm385
          %v387 = vld [vmem:[%s383] sm:$0xf]
          %v388 = vsel %vm386, %v379, %v387
          %389 = vst [vmem:[%s383] sm:$0xf] %v388
          %vm390 = vcmask 122880
          %vm391 = vsmask.f32 256
          %vm392 = vmand %vm390, %vm391
          %v393 = vld [vmem:[%s383 + $0x4] sm:$0x1]
          %v394 = vsel %vm392, %v380, %v393
          %395 = vst [vmem:[%s383 + $0x4] sm:$0x1] %v394
        $region56: #{tpu_custom_call.1} parent=31 // pred_fallthru
          _
        %v396 = vld [vmem:[#allocation2] sm:$0xf]
        %v397 = vld [vmem:[#allocation2 + $0x8] sm:$0xf]
        %v398 = vld [vmem:[#allocation2 + $0x10] sm:$0xf]
        %v399 = vld [vmem:[#allocation2 + $0x18] sm:$0xf]
        %v400 = vld [vmem:[#allocation2 + $0x4] sm:$0x1]
        %v401 = vld [vmem:[#allocation2 + $0xc] sm:$0x1]
        %v402 = vld [vmem:[#allocation2 + $0x14] sm:$0x1]
        %v403 = vld [vmem:[#allocation2 + $0x1c] sm:$0x1]
        %v404 = vld [vmem:[#allocation2] sm:$0xe]
        %v405 = vld [vmem:[#allocation2 + $0x8] sm:$0xe]
        %v406 = vld [vmem:[#allocation2 + $0x10] sm:$0xe]
        %v407 = vld [vmem:[#allocation2 + $0x18] sm:$0xe]
        %s408 = scalar_lea.vmem [#allocation2], 8
        %v409 = vld [vmem:[%s408] sm:$0xf]
        %v410 = vld [vmem:[%s408 + $0x8] sm:$0xf]
        %v411 = vld [vmem:[%s408 + $0x10] sm:$0xf]
        %v412 = vld [vmem:[%s408 + $0x18] sm:$0xf]
        %v413 = vld [vmem:[%s408 + $0x4] sm:$0x1]
        %v414 = vld [vmem:[%s408 + $0xc] sm:$0x1]
        %v415 = vld [vmem:[%s408 + $0x14] sm:$0x1]
        %v416 = vld [vmem:[%s408 + $0x1c] sm:$0x1]
        %v417 = vld [vmem:[%s408] sm:$0xe]
        %v418 = vld [vmem:[%s408 + $0x8] sm:$0xe]
        %v419 = vld [vmem:[%s408 + $0x10] sm:$0xe]
        %v420 = vld [vmem:[%s408 + $0x18] sm:$0xe]
        %s421 = scalar_lea.vmem [#allocation2], 16
        %v422 = vld [vmem:[%s421] sm:$0xf]
        %v423 = vld [vmem:[%s421 + $0x8] sm:$0xf]
        %v424 = vld [vmem:[%s421 + $0x10] sm:$0xf]
        %v425 = vld [vmem:[%s421 + $0x18] sm:$0xf]
        %v426 = vld [vmem:[%s421 + $0x4] sm:$0x1]
        %v427 = vld [vmem:[%s421 + $0xc] sm:$0x1]
        %v428 = vld [vmem:[%s421 + $0x14] sm:$0x1]
        %v429 = vld [vmem:[%s421 + $0x1c] sm:$0x1]
        %v430 = vld [vmem:[%s421] sm:$0xe]
        %v431 = vld [vmem:[%s421 + $0x8] sm:$0xe]
        %v432 = vld [vmem:[%s421 + $0x10] sm:$0xe]
        %v433 = vld [vmem:[%s421 + $0x18] sm:$0xe]
        %v442 = vunpack.c.l.b16 %v396
        %v443 = vunpack.c.l.b16 %v400
        %v444 = vunpack.c.l.b16 %v397
        %v445 = vunpack.c.l.b16 %v401
        %v446 = vunpack.c.l.b16 %v398
        %v447 = vunpack.c.l.b16 %v402
        %v448 = vunpack.c.l.b16 %v399
        %v449 = vunpack.c.l.b16 %v403
        %v450 = vpack.c.b16 %v443, %v442
        %v451 = vpack.c.b16 %v445, %v444
        %v452 = vpack.c.b16 %v447, %v446
        %v453 = vpack.c.b16 %v449, %v448
        %v455 = vshrl.u32 %v450, 16
        %v457 = vshll.u32 %v450, 16
        %v459 = vrot.slane %v457, 1
        %v460 = vor.u32 %v455, %v459
        %v462 = vshrl.u32 %v451, 16
        %v464 = vshll.u32 %v451, 16
        %v466 = vrot.slane %v464, 1
        %v467 = vor.u32 %v462, %v466
        %v469 = vshrl.u32 %v452, 16
        %v471 = vshll.u32 %v452, 16
        %v473 = vrot.slane %v471, 1
        %v474 = vor.u32 %v469, %v473
        %v476 = vshrl.u32 %v453, 16
        %v478 = vshll.u32 %v453, 16
        %v480 = vrot.slane %v478, 1
        %v481 = vor.u32 %v476, %v480
        %482 = vrot.lane.b32.xlu0 %v460, 16
        %v483 = vpop.permute.xlu0 %482
        %484 = vrot.lane.b32.xlu0 %v467, 16
        %v485 = vpop.permute.xlu0 %484
        %486 = vrot.lane.b32.xlu0 %v474, 16
        %v487 = vpop.permute.xlu0 %486
        %488 = vrot.lane.b32.xlu0 %v481, 16
        %v489 = vpop.permute.xlu0 %488
        %v494 = vunpack.c.l.b16 %v404
        %v495 = vunpack.c.l.b16 %v405
        %v496 = vunpack.c.l.b16 %v406
        %v497 = vunpack.c.l.b16 %v407
        %v498 = vpack.c.b16 %v443, %v494
        %v499 = vpack.c.b16 %v445, %v495
        %v500 = vpack.c.b16 %v447, %v496
        %v501 = vpack.c.b16 %v449, %v497
        %v502 = vrot.slane %v498, 1
        %v503 = vrot.slane %v499, 1
        %v504 = vrot.slane %v500, 1
        %v505 = vrot.slane %v501, 1
        %506 = vrot.lane.b32.xlu0 %v502, 32
        %v507 = vpop.permute.xlu0 %506
        %508 = vrot.lane.b32.xlu0 %v503, 32
        %v509 = vpop.permute.xlu0 %508
        %510 = vrot.lane.b32.xlu0 %v504, 32
        %v511 = vpop.permute.xlu0 %510
        %512 = vrot.lane.b32.xlu0 %v505, 32
        %v513 = vpop.permute.xlu0 %512
        %v518 = vunpack.c.l.b16 %v409
        %v519 = vunpack.c.l.b16 %v410
        %v520 = vunpack.c.l.b16 %v411
        %v521 = vunpack.c.l.b16 %v412
        %v522 = vpack.c.b16 %v518, %v518
        %v523 = vpack.c.b16 %v519, %v519
        %v524 = vpack.c.b16 %v520, %v520
        %v525 = vpack.c.b16 %v521, %v521
        %526 = vrot.lane.b32.xlu0 %v522, 48
        %v527 = vpop.permute.xlu0 %526
        %528 = vrot.lane.b32.xlu0 %v523, 48
        %v529 = vpop.permute.xlu0 %528
        %530 = vrot.lane.b32.xlu0 %v524, 48
        %v531 = vpop.permute.xlu0 %530
        %532 = vrot.lane.b32.xlu0 %v525, 48
        %v533 = vpop.permute.xlu0 %532
        %v538 = vunpack.c.l.b16 %v413
        %v539 = vunpack.c.l.b16 %v414
        %v540 = vunpack.c.l.b16 %v415
        %v541 = vunpack.c.l.b16 %v416
        %v542 = vpack.c.b16 %v538, %v518
        %v543 = vpack.c.b16 %v539, %v519
        %v544 = vpack.c.b16 %v540, %v520
        %v545 = vpack.c.b16 %v541, %v521
        %v547 = vshrl.u32 %v542, 16
        %v549 = vshll.u32 %v542, 16
        %v551 = vrot.slane %v549, 1
        %v552 = vor.u32 %v547, %v551
        %v554 = vshrl.u32 %v543, 16
        %v556 = vshll.u32 %v543, 16
        %v558 = vrot.slane %v556, 1
        %v559 = vor.u32 %v554, %v558
        %v561 = vshrl.u32 %v544, 16
        %v563 = vshll.u32 %v544, 16
        %v565 = vrot.slane %v563, 1
        %v566 = vor.u32 %v561, %v565
        %v568 = vshrl.u32 %v545, 16
        %v570 = vshll.u32 %v545, 16
        %v572 = vrot.slane %v570, 1
        %v573 = vor.u32 %v568, %v572
        %574 = vrot.lane.b32.xlu0 %v552, 64
        %v575 = vpop.permute.xlu0 %574
        %576 = vrot.lane.b32.xlu0 %v559, 64
        %v577 = vpop.permute.xlu0 %576
        %578 = vrot.lane.b32.xlu0 %v566, 64
        %v579 = vpop.permute.xlu0 %578
        %580 = vrot.lane.b32.xlu0 %v573, 64
        %v581 = vpop.permute.xlu0 %580
        %v586 = vunpack.c.l.b16 %v417
        %v587 = vunpack.c.l.b16 %v418
        %v588 = vunpack.c.l.b16 %v419
        %v589 = vunpack.c.l.b16 %v420
        %v590 = vpack.c.b16 %v538, %v586
        %v591 = vpack.c.b16 %v539, %v587
        %v592 = vpack.c.b16 %v540, %v588
        %v593 = vpack.c.b16 %v541, %v589
        %v594 = vrot.slane %v590, 1
        %v595 = vrot.slane %v591, 1
        %v596 = vrot.slane %v592, 1
        %v597 = vrot.slane %v593, 1
        %598 = vrot.lane.b32.xlu0 %v594, 80
        %v599 = vpop.permute.xlu0 %598
        %600 = vrot.lane.b32.xlu0 %v595, 80
        %v601 = vpop.permute.xlu0 %600
        %602 = vrot.lane.b32.xlu0 %v596, 80
        %v603 = vpop.permute.xlu0 %602
        %604 = vrot.lane.b32.xlu0 %v597, 80
        %v605 = vpop.permute.xlu0 %604
        %v610 = vunpack.c.l.b16 %v422
        %v611 = vunpack.c.l.b16 %v423
        %v612 = vunpack.c.l.b16 %v424
        %v613 = vunpack.c.l.b16 %v425
        %v614 = vpack.c.b16 %v610, %v610
        %v615 = vpack.c.b16 %v611, %v611
        %v616 = vpack.c.b16 %v612, %v612
        %v617 = vpack.c.b16 %v613, %v613
        %618 = vrot.lane.b32.xlu0 %v614, 96
        %v619 = vpop.permute.xlu0 %618
        %620 = vrot.lane.b32.xlu0 %v615, 96
        %v621 = vpop.permute.xlu0 %620
        %622 = vrot.lane.b32.xlu0 %v616, 96
        %v623 = vpop.permute.xlu0 %622
        %624 = vrot.lane.b32.xlu0 %v617, 96
        %v625 = vpop.permute.xlu0 %624
        %v630 = vunpack.c.l.b16 %v426
        %v631 = vunpack.c.l.b16 %v427
        %v632 = vunpack.c.l.b16 %v428
        %v633 = vunpack.c.l.b16 %v429
        %v634 = vpack.c.b16 %v630, %v610
        %v635 = vpack.c.b16 %v631, %v611
        %v636 = vpack.c.b16 %v632, %v612
        %v637 = vpack.c.b16 %v633, %v613
        %v639 = vshrl.u32 %v634, 16
        %v641 = vshll.u32 %v634, 16
        %v643 = vrot.slane %v641, 1
        %v644 = vor.u32 %v639, %v643
        %v646 = vshrl.u32 %v635, 16
        %v648 = vshll.u32 %v635, 16
        %v650 = vrot.slane %v648, 1
        %v651 = vor.u32 %v646, %v650
        %v653 = vshrl.u32 %v636, 16
        %v655 = vshll.u32 %v636, 16
        %v657 = vrot.slane %v655, 1
        %v658 = vor.u32 %v653, %v657
        %v660 = vshrl.u32 %v637, 16
        %v662 = vshll.u32 %v637, 16
        %v664 = vrot.slane %v662, 1
        %v665 = vor.u32 %v660, %v664
        %666 = vrot.lane.b32.xlu0 %v644, 112
        %v667 = vpop.permute.xlu0 %666
        %668 = vrot.lane.b32.xlu0 %v651, 112
        %v669 = vpop.permute.xlu0 %668
        %670 = vrot.lane.b32.xlu0 %v658, 112
        %v671 = vpop.permute.xlu0 %670
        %672 = vrot.lane.b32.xlu0 %v665, 112
        %v673 = vpop.permute.xlu0 %672
        %v678 = vunpack.c.l.b16 %v430
        %v679 = vunpack.c.l.b16 %v431
        %v680 = vunpack.c.l.b16 %v432
        %v681 = vunpack.c.l.b16 %v433
        %v682 = vpack.c.b16 %v630, %v678
        %v683 = vpack.c.b16 %v631, %v679
        %v684 = vpack.c.b16 %v632, %v680
        %v685 = vpack.c.b16 %v633, %v681
        %v686 = vrot.slane %v682, 1
        %v687 = vrot.slane %v683, 1
        %v688 = vrot.slane %v684, 1
        %v689 = vrot.slane %v685, 1
        %vm690 = vcmask 130048
        %v693 = vsel %vm690, %v396, %v483
        %v696 = vsel %vm690, %v397, %v485
        %v699 = vsel %vm690, %v398, %v487
        %v702 = vsel %vm690, %v399, %v489
        %vm703 = vcmask 261120
        %v705 = vsel %vm703, %v693, %v507
        %v707 = vsel %vm703, %v696, %v509
        %v709 = vsel %vm703, %v699, %v511
        %v711 = vsel %vm703, %v702, %v513
        %vm712 = vcmask 392192
        %v714 = vsel %vm712, %v705, %v527
        %v716 = vsel %vm712, %v707, %v529
        %v718 = vsel %vm712, %v709, %v531
        %v720 = vsel %vm712, %v711, %v533
        %vm721 = vcmask 523264
        %v723 = vsel %vm721, %v714, %v575
        %v725 = vsel %vm721, %v716, %v577
        %v727 = vsel %vm721, %v718, %v579
        %v729 = vsel %vm721, %v720, %v581
        %vm730 = vcmask 654336
        %v732 = vsel %vm730, %v723, %v599
        %v734 = vsel %vm730, %v725, %v601
        %v736 = vsel %vm730, %v727, %v603
        %v738 = vsel %vm730, %v729, %v605
        %vm739 = vcmask 785408
        %v741 = vsel %vm739, %v732, %v619
        %v743 = vsel %vm739, %v734, %v621
        %v745 = vsel %vm739, %v736, %v623
        %v747 = vsel %vm739, %v738, %v625
        %vm748 = vcmask 916480
        %v750 = vsel %vm748, %v741, %v667
        %v752 = vsel %vm748, %v743, %v669
        %v754 = vsel %vm748, %v745, %v671
        %v756 = vsel %vm748, %v747, %v673
        %v761 = vunpack.c.l.b16 %v750
        %v762 = vunpack.c.l.b16 %v686
        %v763 = vunpack.c.l.b16 %v752
        %v764 = vunpack.c.l.b16 %v687
        %v765 = vunpack.c.l.b16 %v754
        %v766 = vunpack.c.l.b16 %v688
        %v767 = vunpack.c.l.b16 %v756
        %v768 = vunpack.c.l.b16 %v689
        %v769 = vld [vmem:[%s1] sm:$0xf]
        %v770 = vld [vmem:[%s1 + $0x4] sm:$0xf]
        %v771 = vld [vmem:[%s1 + $0x8] sm:$0xf]
        %v772 = vld [vmem:[%s1 + $0xc] sm:$0xf]
        %v773 = vld [vmem:[%s1 + $0x10] sm:$0xf]
        %v774 = vld [vmem:[%s1 + $0x14] sm:$0xf]
        %v775 = vld [vmem:[%s1 + $0x18] sm:$0xf]
        %v776 = vld [vmem:[%s1 + $0x1c] sm:$0xf]
        %v777 = vld [vmem:[%s1 + $0x20] sm:$0xf]
        %v778 = vld [vmem:[%s1 + $0x24] sm:$0xf]
        %v779 = vld [vmem:[%s1 + $0x28] sm:$0xf]
        %v780 = vld [vmem:[%s1 + $0x2c] sm:$0xf]
        %v781 = vld [vmem:[%s1 + $0x30] sm:$0xf]
        %v782 = vld [vmem:[%s1 + $0x34] sm:$0xf]
        %v783 = vld [vmem:[%s1 + $0x38] sm:$0xf]
        %v784 = vld [vmem:[%s1 + $0x3c] sm:$0xf]
        %v785 = vld [vmem:[%s1 + $0x40] sm:$0xf]
        %v786 = vld [vmem:[%s1 + $0x44] sm:$0xf]
        %v787 = vld [vmem:[%s2] sm:$0x1]
        %v789 = vlaneseq
        %v790 = vshrl.u32 %v789, 7
        %v791 = vsub.s32 0, %v790
        %v792 = vrot.slane %v787, %v791
        %v794 = vpack.c.b16 %v763, %v761
        %v795 = vpack.c.b16 %v764, %v762
        %v796 = vpack.c.b16 %v767, %v765
        %v797 = vpack.c.b16 %v768, %v766
        %v818 = vunpack.c.l.b16 %v769
        %v819 = vunpack.c.l.b16 %v770
        %v820 = vunpack.c.l.b16 %v771
        %v821 = vunpack.c.l.b16 %v772
        %v822 = vunpack.c.l.b16 %v773
        %v823 = vunpack.c.l.b16 %v774
        %v824 = vunpack.c.l.b16 %v775
        %v825 = vunpack.c.l.b16 %v776
        %v826 = vunpack.c.l.b16 %v777
        %v827 = vunpack.c.l.b16 %v778
        %v828 = vunpack.c.l.b16 %v779
        %v829 = vunpack.c.l.b16 %v780
        %v830 = vunpack.c.l.b16 %v781
        %v831 = vunpack.c.l.b16 %v782
        %v832 = vunpack.c.l.b16 %v783
        %v833 = vunpack.c.l.b16 %v784
        %v834 = vunpack.c.l.b16 %v785
        %v835 = vunpack.c.l.b16 %v786
        %v836 = vpack.c.b16 %v819, %v818
        %v837 = vpack.c.b16 %v821, %v820
        %v838 = vpack.c.b16 %v823, %v822
        %v839 = vpack.c.b16 %v825, %v824
        %v840 = vpack.c.b16 %v827, %v826
        %v841 = vpack.c.b16 %v829, %v828
        %v842 = vpack.c.b16 %v831, %v830
        %v843 = vpack.c.b16 %v833, %v832
        %v844 = vpack.c.b16 %v835, %v834
        %v855 = vsel %vm690, %v795, 0
        %v858 = vsel %vm690, %v797, 0
        %860 = vmatprep.subr.bf16.mxu0 0
        %861 = vmatpush1.bf16.msra.mxu0 %v843
        %862 = vmatprep.subr.bf16.mxu0 0
        %863 = vmatpush1.bf16.msra.mxu0 %v842
        %864 = vmatprep.subr.bf16.mxu0 0
        %865 = vmatpush1.bf16.msra.mxu0 %v841
        %866 = vmatprep.subr.bf16.mxu0 0
        %867 = vmatpush1.bf16.msra.mxu0 %v840
        %868 = vmatprep.subr.bf16.mxu0 0
        %869 = vmatpush1.bf16.msra.mxu0 %v839
        %870 = vmatprep.subr.bf16.mxu0 0
        %871 = vmatpush1.bf16.msra.mxu0 %v838
        %872 = vmatprep.subr.bf16.mxu0 0
        %873 = vmatpush1.bf16.msra.mxu0 %v837
        %874 = vmatprep.subr.bf16.mxu0 0
        %875 = vmatpush1.bf16.msra.mxu0 %v836
        %876 = vmatprep.subr.bf16.mxu0 0
        %877 = vmatpush2.bf16.msra.mxu0 0
        %878 = vmatprep.subr.bf16.mxu0 0
        %879 = vmatpush2.bf16.msra.mxu0 0
        %880 = vmatprep.subr.bf16.mxu0 0
        %881 = vmatpush2.bf16.msra.mxu0 0
        %882 = vmatprep.subr.bf16.mxu0 0
        %883 = vmatpush2.bf16.msra.mxu0 0
        %884 = vmatprep.subr.bf16.mxu0 0
        %885 = vmatpush2.bf16.msra.mxu0 0
        %886 = vmatprep.subr.bf16.mxu0 0
        %887 = vmatpush2.bf16.msra.mxu0 0
        %888 = vmatprep.subr.bf16.mxu0 0
        %889 = vmatpush2.bf16.msra.mxu0 0
        %890 = vmatprep.subr.bf16.mxu0 0
        %891 = vmatpush2.bf16.msra.mxu0 %v844
        %892 = vmatprep.mubr.bf16.mxu0 %v855
        %893 = vmatmul.mubr.bf16.gmra.mxu0 %v794
        %v894 = vpop.f32.mrf.mxu0
        %v895 = vadd.f32 %v792, %v894
        %v896 = vpop.f32.mrf.mxu0
        %v897 = vpop.f32.mrf.mxu0
        %v898 = vadd.f32 %v792, %v897
        %v899 = vpop.f32.mrf.mxu0
        %900 = vmatprep.mubr.bf16.mxu0 %v858
        %901 = vmatmul.mubr.bf16.gmra.mxu0 %v796
        %v902 = vpop.f32.mrf.mxu0
        %v903 = vadd.f32 %v792, %v902
        %v904 = vpop.f32.mrf.mxu0
        %v905 = vpop.f32.mrf.mxu0
        %v906 = vadd.f32 %v792, %v905
        %v907 = vpop.f32.mrf.mxu0
        %908 = vdwg.mxu0
        %v909 = vmax.f32 %v895, 0.0
        %v910 = vmax.f32 %v898, 0.0
        %v911 = vmax.f32 %v903, 0.0
        %v912 = vmax.f32 %v906, 0.0
        %vm913 = vcmask 64512
        %914 = vst.msk [vmem:[%s177] sm:$0xff] %vm913, %v909
        %915 = vst.msk [vmem:[%s177 + $0x8] sm:$0xff] %vm913, %v910
        %916 = vst.msk [vmem:[%s177 + $0x10] sm:$0xff] %vm913, %v911
        %917 = vst.msk [vmem:[%s177 + $0x18] sm:$0xff] %vm913, %v912
        %s918 = sand.u32 %s107, 1
        %s919 = scalar_lea.sflag [#allocation4], %s918
        %s920 = sand.u32 %s107, 1
        %s921 = smul.addr %s920, 32
        %s922 = scalar_lea.vmem [#allocation3], %s921
        // Predicated region
        $region57: #{tpu_custom_call.1} parent=31 // pred_check
          %p923 = pneg %p117
        $region58: #{tpu_custom_call.1} parent=31 // pred_check_branch
          %925 = sbr.rel (%p923) target = $region60
        $region59: #{tpu_custom_call.1} parent=31 // pred_region
          %s926 = smul.u32 4, %s22
          %s928 = ssub.s32 512, 512
          %929 = vsyncadd %s919, %s928
          %s930 = smul.addr %s21, 8
          %s931 = sadd.s32 %s926, %s930
          %s932 = smul.addr %s931, 128
          %s933 = scalar_lea.hbm %s3, %s932
          %s934 = sshll.u32 %s922, 4
          %s935 = int_to_ptr.vmem [resolvable:$true] %s934
          %940 = dma.vmem_to_hbm [thread:$0]  %s935, 512, %s933, %s919, 128, 128, 8
        $region60: #{tpu_custom_call.1} parent=31 // pred_fallthru
          _
      $region32: #{tpu_custom_call.1} parent=5 // pred_fallthru
        _
      %p941 = scmp.le.s32.totalorder 2, %s12
      // Predicated region
      $region61: #{tpu_custom_call.1} parent=5 // pred_check
        %p942 = pneg %p941
      $region62: #{tpu_custom_call.1} parent=5 // pred_check_branch
        %944 = sbr.rel (%p942) target = $region64
      $region63: #{tpu_custom_call.1} parent=5 // pred_region
        %s945 = ssub.s32 %s12, 2
        // Predicated region
        $region65: #{tpu_custom_call.1} parent=63 // pred_check
          %p946 = pneg %p123
        $region66: #{tpu_custom_call.1} parent=63 // pred_check_branch
          %948 = sbr.rel (%p946) target = $region68
        $region67: #{tpu_custom_call.1} parent=63 // pred_region
          %s949 = sand.u32 %s108, 1
          %s950 = scalar_lea.sflag [#allocation4], %s949
          %s951 = sand.u32 %s108, 1
          %s952 = smul.addr %s951, 32
          %s953 = scalar_lea.vmem [#allocation3], %s952
          %954 = dma.done %s950, 512
        $region68: #{tpu_custom_call.1} parent=63 // pred_fallthru
          _
      $region64: #{tpu_custom_call.1} parent=5 // pred_fallthru
        _
    $region6: #{tpu_custom_call.1} parent=1 // loop_footer
      %s16 = sadd.s32 1, %s12
    $region7: #{tpu_custom_call.1} parent=1 // loop_footer_branch
      %11 = sbr.rel target = $region3
    $region8: #{tpu_custom_call.1} parent=1 // loop_exit
      _
    %955 = vsyncpa [#allocation4], 1
    %s956 = scalar_lea.sflag [#allocation4], 1
    %957 = vsyncpa %s956, 1

</llo_original>
